<compile_context>
chip_gen: v6e
topology: v6e:2x2x1
jax: 0.10.0
libtpu: 0.0.40
codegen_flags: <defaults>
</compile_context>

<pallas_src>
import functools
import math

import numpy as np
import jax
import jax.numpy as jnp
from jax.experimental import pallas as pl
from jax.experimental.pallas import tpu as pltpu

# ------------------------------ hyperparameters -------------------------------
VOCAB = 16        # vocab_size
D_MODEL = 32      # embedding_size
NHEAD = 1         # Tremo hardcodes nhead = 1  ->  head_dim = D_MODEL
DIM_FF = 64       # dim_feedforward
SEQ = 8
BATCH = 2
LN_EPS = 1e-5
LANE = 128        # lane width of the fused input/param/output slabs

# -------- static row offsets inside the packed (200, 128) parameter slab -------
R_EMB = 0                       # [mean_table | var_table]          (V,   2D)
R_QKV = R_EMB + VOCAB           # fused Q/K/V projection            (D,   3D)
R_WO = R_QKV + D_MODEL          # output projection                 (D,   D)
R_W1 = R_WO + D_MODEL           # FFN in                            (D,   F)
R_W2 = R_W1 + D_MODEL           # FFN out                           (F,   D)
R_VEC = R_W2 + DIM_FF           # 10 packed small vectors           (8,   128)
R_PE = R_VEC + 8                # positional encoding per row       (N,   D)


# ---------------------------------- kernel ------------------------------------
def _tremo_kernel(batch,        # python int, closed over via functools.partial
                  act_ref,      # (N, 128) f32: [eps(0:D) | tok(D:D+1) | pad]
                  par_ref,      # (200, 128) f32 packed parameter slab
                  out_ref):     # (N, 128) f32: [out | mean | var | pad]
    f32 = jnp.float32
    D, F, V = D_MODEL, DIM_FF, VOCAB
    N = act_ref.shape[0]

    # ---- per-call activations ----
    eps = act_ref[:, 0:D]                                   # (N, D)
    tok = act_ref[:, D:D + 1].astype(jnp.int32)             # (N, 1)  exact for 0..V-1

    # ---- static slices of the single parameter slab (sublane-aligned rows) ----
    pe = par_ref[R_PE:R_PE + N, 0:D]                        # (N, D)
    emb_w = par_ref[R_EMB:R_EMB + V, 0:2 * D]               # (V, 2D)
    w_qkv = par_ref[R_QKV:R_QKV + D, 0:3 * D]               # (D, 3D)  (scale folded)
    w_o = par_ref[R_WO:R_WO + D, 0:D]                       # (D, D)
    w1 = par_ref[R_W1:R_W1 + D, 0:F]                        # (D, F)
    w2 = par_ref[R_W2:R_W2 + F, 0:D]                        # (F, D)
    vecs = par_ref[R_VEC:R_VEC + 8, :]                      # (8, 128)
    ln1_w, ln1_b = vecs[0:1, 0:D], vecs[1:2, 0:D]
    ln2_w, ln2_b = vecs[2:3, 0:D], vecs[3:4, 0:D]
    b_o, b_2 = vecs[4:5, 0:D], vecs[5:6, 0:D]
    b_qkv = vecs[6:7, 0:3 * D]
    b_1 = vecs[7:8, 0:F]

    # ---- embeddings: one-hot @ [mean_table | var_table]  (single MXU op) ----
    onehot = (jax.lax.broadcasted_iota(jnp.int32, (N, V), 1) == tok).astype(f32)
    emb = jnp.dot(onehot, emb_w, preferred_element_type=f32)          # (N, 2D)
    mean = emb[:, 0:D]
    var = emb[:, D:2 * D]

    # ---- reparameterization + additive sinusoidal positional encoding ----
    z = mean + var * eps + pe                                          # (N, D)

    def layer_norm(y, w, b):  # biased variance, matches torch.nn.LayerNorm
        mu = jnp.mean(y, axis=-1, keepdims=True)
        yc = y - mu
        vv = jnp.mean(yc * yc, axis=-1, keepdims=True)
        return yc * jax.lax.rsqrt(vv + LN_EPS) * w + b

    # ---- pre-norm self-attention block (nhead = 1) ----
    xn = layer_norm(z, ln1_w, ln1_b)
    qkv = jnp.dot(xn, w_qkv, preferred_element_type=f32) + b_qkv       # (N, 3D)
    q = qkv[:, 0:D]          # already pre-scaled by 1/sqrt(D) via weight fold
    k = qkv[:, D:2 * D]
    v = qkv[:, 2 * D:3 * D]

    # Block-diagonal mask generated in-kernel: rows are seq-major, batch = idx % B.
    row_b = jax.lax.broadcasted_iota(jnp.int32, (N, N), 0) % batch
    col_b = jax.lax.broadcasted_iota(jnp.int32, (N, N), 1) % batch
    bias = jnp.where(row_b == col_b, 0.0, -1e9).astype(f32)            # (N, N)

    scores = jax.lax.dot_general(q, k, (((1,), (1,)), ((), ())),
                                 preferred_element_type=f32) + bias    # (N, N)
    scores = scores - jnp.max(scores, axis=-1, keepdims=True)          # mask before max
    p = jnp.exp(scores)
    denom = jnp.sum(p, axis=-1, keepdims=True)
    p = p * pl.reciprocal(denom, approx=True)                          # EUP, not VPU
    ctx = jnp.dot(p, v, preferred_element_type=f32)                    # (N, D)
    attn = jnp.dot(ctx, w_o, preferred_element_type=f32) + b_o

    x1 = z + attn                                   # residual 1 (dropout1 = id)

    # ---- pre-norm feed-forward block ----
    x2n = layer_norm(x1, ln2_w, ln2_b)
    h = jnp.maximum(jnp.dot(x2n, w1, preferred_element_type=f32) + b_1, 0.0)
    ff = jnp.dot(h, w2, preferred_element_type=f32) + b_2
    out = x1 + ff                                   # residual 2 (dropout2 = id)

    # ---- single lane-dense (N, 128) store: [out | mean | var | pad] ----
    pad = jnp.zeros((N, LANE - 3 * D), f32)
    out_ref[...] = jnp.concatenate([out, mean, var, pad], axis=-1)


# --------------------------------- wrapper -------------------------------------
@jax.jit
def tremo_forward(tokens_sb, eps_sbd, params_slab):
    """tokens_sb: (S, B) int32; eps_sbd: (S, B, D) f32 ~ N(0, 1);
    params_slab: (200, 128) f32 packed parameters.
    Returns (out, mean, var), each (S, B, D) (PyTorch seq-first layout)."""
    S, B = tokens_sb.shape
    D = eps_sbd.shape[-1]
    N = S * B

    # One lane-dense per-call activation slab: [eps | tok(as f32) | zero pad].
    act = jnp.concatenate(
        [eps_sbd.reshape(N, D),
         tokens_sb.reshape(N, 1).astype(jnp.float32),
         jnp.zeros((N, LANE - D - 1), jnp.float32)], axis=-1)          # (N, 128)

    vmem = pl.BlockSpec(memory_space=pltpu.MemorySpace.VMEM)
    fused = pl.pallas_call(
        functools.partial(_tremo_kernel, B),
        out_shape=jax.ShapeDtypeStruct((N, LANE), jnp.float32),
        in_specs=[vmem, vmem],
        out_specs=vmem,
    )(act, params_slab)

    shape = (S, B, D)
    out = fused[:, 0:D].reshape(shape)
    mean = fused[:, D:2 * D].reshape(shape)
    var = fused[:, 2 * D:3 * D].reshape(shape)
    return out, mean, var


# ---------------------------- parameter utilities ------------------------------
def sinusoidal_pe(S, D):
    pos = np.arange(S, dtype=np.float64)[:, None]
    div = np.exp(-math.log(10000.0) * np.arange(0, D, 2, dtype=np.float64) / D)
    pe = np.zeros((S, D), dtype=np.float32)
    pe[:, 0::2] = np.sin(pos * div)
    pe[:, 1::2] = np.cos(pos * div)
    return jnp.asarray(pe)


def init_raw_params(key):
    D, F, V = D_MODEL, DIM_FF, VOCAB
    ks = jax.random.split(key, 18)

    def rnd(i, shape, s):
        return (s * jax.random.normal(ks[i], shape)).astype(jnp.float32)

    return {
        "emb_mean": rnd(0, (V, D), 0.5),
        "emb_var": rnd(1, (V, D), 0.2),
        # projection weights stored pre-transposed: y = x @ W + b
        "wq": rnd(2, (D, D), 0.1), "wk": rnd(3, (D, D), 0.1),
        "wv": rnd(4, (D, D), 0.1), "wo": rnd(5, (D, D), 0.1),
        "bq": rnd(6, (D,), 0.02), "bk": rnd(7, (D,), 0.02),
        "bv": rnd(8, (D,), 0.02), "bo": rnd(9, (D,), 0.02),
        "ln1_w": 1.0 + rnd(10, (D,), 0.05), "ln1_b": rnd(11, (D,), 0.05),
        "ln2_w": 1.0 + rnd(12, (D,), 0.05), "ln2_b": rnd(13, (D,), 0.05),
        "w1": rnd(14, (D, F), 0.1), "b1": rnd(15, (F,), 0.02),
        "w2": rnd(16, (F, D), 0.1), "b2": rnd(17, (D,), 0.02),
    }


def pack_params(p, S, B):
    """Pack everything static into ONE (R_PE + S*B, 128) f32 slab (single DMA)."""
    D, F, N = D_MODEL, DIM_FF, S * B
    scale = 1.0 / math.sqrt(D)  # head_dim == D since nhead == 1

    # Fold the attention scale into the Q columns of the fused QKV projection.
    w_qkv = jnp.concatenate([p["wq"] * scale, p["wk"], p["wv"]], axis=1)  # (D, 3D)
    b_qkv = jnp.concatenate([p["bq"] * scale, p["bk"], p["bv"]])          # (3D,)

    vecs = jnp.zeros((8, LANE), jnp.float32)
    for row, (val, w) in enumerate([
            (p["ln1_w"], D), (p["ln1_b"], D), (p["ln2_w"], D), (p["ln2_b"], D),
            (p["bo"], D), (p["b2"], D), (b_qkv, 3 * D), (p["b1"], F)]):
        vecs = vecs.at[row, :w].set(val)

    pe = jnp.repeat(sinusoidal_pe(S, D), B, axis=0)                       # (N, D)
    emb_w = jnp.concatenate([p["emb_mean"], p["emb_var"]], axis=1)        # (V, 2D)

    def pad_lanes(a):
        return jnp.pad(a, ((0, 0), (0, LANE - a.shape[1])))

    slab = jnp.concatenate([
        pad_lanes(emb_w),        # rows R_EMB
        pad_lanes(w_qkv),        # rows R_QKV
        pad_lanes(p["wo"]),      # rows R_WO
        pad_lanes(p["w1"]),      # rows R_W1
        pad_lanes(p["w2"]),      # rows R_W2
        vecs,                    # rows R_VEC
        pad_lanes(pe),           # rows R_PE
    ], axis=0).astype(jnp.float32)
    assert slab.shape == (R_PE + N, LANE)
    return slab


# ----------------------------- pure-JAX reference ------------------------------
def reference(tokens_sb, eps_sbd, p):
    HP = jax.lax.Precision.HIGHEST
    S, B = tokens_sb.shape
    D = D_MODEL

    mean = p["emb_mean"][tokens_sb]                           # (S, B, D)
    var = p["emb_var"][tokens_sb]
    z = mean + var * eps_sbd + sinusoidal_pe(S, D)[:, None, :]

    def ln(y, w, b):
        mu = jnp.mean(y, axis=-1, keepdims=True)
        vv = jnp.mean((y - mu) ** 2, axis=-1, keepdims=True)
        return (y - mu) * jax.lax.rsqrt(vv + LN_EPS) * w + b

    xn = ln(z, p["ln1_w"], p["ln1_b"])
    q = jnp.einsum("sbd,de->sbe", xn, p["wq"], precision=HP) + p["bq"]
    k = jnp.einsum("sbd,de->sbe", xn, p["wk"], precision=HP) + p["bk"]
    v = jnp.einsum("sbd,de->sbe", xn, p["wv"], precision=HP) + p["bv"]

    scores = jnp.einsum("sbd,tbd->bst", q, k, precision=HP) / math.sqrt(D)
    attw = jax.nn.softmax(scores, axis=-1)
    ctx = jnp.einsum("bst,tbd->sbd", attw, v, precision=HP)
    attn = jnp.einsum("sbd,de->sbe", ctx, p["wo"], precision=HP) + p["bo"]
    x1 = z + attn

    x2n = ln(x1, p["ln2_w"], p["ln2_b"])
    h = jnp.maximum(jnp.einsum("sbd,df->sbf", x2n, p["w1"], precision=HP) + p["b1"], 0.0)
    ff = jnp.einsum("sbf,fd->sbd", h, p["w2"], precision=HP) + p["b2"]
    return x1 + ff, mean, var


# ------------------------------------ main -------------------------------------
if __name__ == "__main__":
    key = jax.random.PRNGKey(0)
    k_tok, k_eps, k_par = jax.random.split(key, 3)

    tokens = jax.random.randint(k_tok, (SEQ, BATCH), 0, VOCAB, dtype=jnp.int32)
    eps = jax.random.normal(k_eps, (SEQ, BATCH, D_MODEL), jnp.float32)

    raw = init_raw_params(k_par)
    params_slab = pack_params(raw, SEQ, BATCH)

    out, mean, var = tremo_forward(tokens, eps, params_slab)
    out = jax.block_until_ready(out)

    ref_out, ref_mean, ref_var = reference(tokens, eps, raw)

    assert out.shape == (SEQ, BATCH, D_MODEL)
    assert mean.shape == (SEQ, BATCH, D_MODEL) and var.shape == (SEQ, BATCH, D_MODEL)
    assert jnp.allclose(mean, ref_mean, atol=1e-4, rtol=1e-4), "mean mismatch"
    assert jnp.allclose(var, ref_var, atol=1e-4, rtol=1e-4), "var mismatch"
    # out tolerance relaxed vs f32-exact (5e-4) to cover the EUP approximate
    # reciprocal used for the softmax denominator.
    assert jnp.allclose(out, ref_out, atol=2e-3, rtol=2e-3), "out mismatch"

    print("KERNEL_OK")
</pallas_src>

<mosaic_0001>
module attributes {stable_mosaic.version = 11 : i64} {
  func.func @_tremo_kernel(%arg0: memref<16x128xf32, #tpu.memory_space<vmem>>, %arg1: memref<200x128xf32, #tpu.memory_space<vmem>>, %arg2: memref<16x128xf32, #tpu.memory_space<vmem>>) attributes {dimension_semantics = [], scalar_prefetch = 0 : i64, scratch_operands = 0 : i64, tpu.core_type = #tpu.core_type<tc>} {
    %c0 = arith.constant 0 : index
    %c0_0 = arith.constant 0 : index
    %0 = vector.load %arg0[%c0, %c0_0] : memref<16x128xf32, #tpu.memory_space<vmem>>, vector<16x32xf32>
    %c0_1 = arith.constant 0 : index
    %c32 = arith.constant 32 : index
    %1 = vector.load %arg0[%c0_1, %c32] : memref<16x128xf32, #tpu.memory_space<vmem>>, vector<16x1xf32>
    %2 = arith.fptosi %1 : vector<16x1xf32> to vector<16x1xi32>
    %c184 = arith.constant 184 : index
    %c0_2 = arith.constant 0 : index
    %3 = vector.load %arg1[%c184, %c0_2] : memref<200x128xf32, #tpu.memory_space<vmem>>, vector<16x32xf32>
    %c0_3 = arith.constant 0 : index
    %c0_4 = arith.constant 0 : index
    %4 = vector.load %arg1[%c0_3, %c0_4] : memref<200x128xf32, #tpu.memory_space<vmem>>, vector<16x64xf32>
    %c16 = arith.constant 16 : index
    %c0_5 = arith.constant 0 : index
    %5 = vector.load %arg1[%c16, %c0_5] : memref<200x128xf32, #tpu.memory_space<vmem>>, vector<32x96xf32>
    %c48 = arith.constant 48 : index
    %c0_6 = arith.constant 0 : index
    %6 = vector.load %arg1[%c48, %c0_6] : memref<200x128xf32, #tpu.memory_space<vmem>>, vector<32x32xf32>
    %c80 = arith.constant 80 : index
    %c0_7 = arith.constant 0 : index
    %7 = vector.load %arg1[%c80, %c0_7] : memref<200x128xf32, #tpu.memory_space<vmem>>, vector<32x64xf32>
    %c112 = arith.constant 112 : index
    %c0_8 = arith.constant 0 : index
    %8 = vector.load %arg1[%c112, %c0_8] : memref<200x128xf32, #tpu.memory_space<vmem>>, vector<64x32xf32>
    %c176 = arith.constant 176 : index
    %c0_9 = arith.constant 0 : index
    %9 = vector.load %arg1[%c176, %c0_9] : memref<200x128xf32, #tpu.memory_space<vmem>>, vector<8x128xf32>
    %10 = vector.extract_strided_slice %9 {offsets = [0, 0], sizes = [1, 32], strides = [1, 1]} : vector<8x128xf32> to vector<1x32xf32>
    %11 = vector.extract_strided_slice %9 {offsets = [1, 0], sizes = [1, 32], strides = [1, 1]} : vector<8x128xf32> to vector<1x32xf32>
    %12 = vector.extract_strided_slice %9 {offsets = [2, 0], sizes = [1, 32], strides = [1, 1]} : vector<8x128xf32> to vector<1x32xf32>
    %13 = vector.extract_strided_slice %9 {offsets = [3, 0], sizes = [1, 32], strides = [1, 1]} : vector<8x128xf32> to vector<1x32xf32>
    %14 = vector.extract_strided_slice %9 {offsets = [4, 0], sizes = [1, 32], strides = [1, 1]} : vector<8x128xf32> to vector<1x32xf32>
    %15 = vector.extract_strided_slice %9 {offsets = [5, 0], sizes = [1, 32], strides = [1, 1]} : vector<8x128xf32> to vector<1x32xf32>
    %16 = vector.extract_strided_slice %9 {offsets = [6, 0], sizes = [1, 96], strides = [1, 1]} : vector<8x128xf32> to vector<1x96xf32>
    %17 = vector.extract_strided_slice %9 {offsets = [7, 0], sizes = [1, 64], strides = [1, 1]} : vector<8x128xf32> to vector<1x64xf32>
    %18 = tpu.iota {dimensions = array<i32: 1>} : vector<16x16xi32>
    %19 = vector.broadcast %2 : vector<16x1xi32> to vector<16x16xi32>
    %20 = arith.cmpi eq, %18, %19 : vector<16x16xi32>
    %21 = arith.extui %20 : vector<16x16xi1> to vector<16x16xi32>
    %22 = arith.sitofp %21 : vector<16x16xi32> to vector<16x16xf32>
    %cst = arith.constant dense<0.000000e+00> : vector<16x64xf32>
    %23 = tpu.matmul %22, %4, %cst {dimension_numbers = #tpu.dot_dimension_numbers<[1], [0], [0], [1], [0, 0, 1, 1], [], []>} : vector<16x16xf32>, vector<16x64xf32>, vector<16x64xf32> -> vector<16x64xf32>
    %24 = vector.extract_strided_slice %23 {offsets = [0, 0], sizes = [16, 32], strides = [1, 1]} : vector<16x64xf32> to vector<16x32xf32>
    %25 = vector.extract_strided_slice %23 {offsets = [0, 32], sizes = [16, 32], strides = [1, 1]} : vector<16x64xf32> to vector<16x32xf32>
    %26 = arith.mulf %25, %0 : vector<16x32xf32>
    %27 = arith.addf %24, %26 : vector<16x32xf32>
    %28 = arith.addf %27, %3 : vector<16x32xf32>
    %cst_10 = arith.constant dense<0.000000e+00> : vector<16xf32>
    %29 = vector.multi_reduction <add>, %28, %cst_10 [1] : vector<16x32xf32> to vector<16xf32>
    %30 = vector.shape_cast %29 : vector<16xf32> to vector<16x1xf32>
    %cst_11 = arith.constant 3.200000e+01 : f32
    %31 = vector.broadcast %cst_11 : f32 to vector<16x1xf32>
    %32 = arith.divf %30, %31 : vector<16x1xf32>
    %33 = vector.broadcast %32 : vector<16x1xf32> to vector<16x32xf32>
    %34 = arith.subf %28, %33 : vector<16x32xf32>
    %35 = arith.mulf %34, %34 : vector<16x32xf32>
    %cst_12 = arith.constant dense<0.000000e+00> : vector<16xf32>
    %36 = vector.multi_reduction <add>, %35, %cst_12 [1] : vector<16x32xf32> to vector<16xf32>
    %37 = vector.shape_cast %36 : vector<16xf32> to vector<16x1xf32>
    %cst_13 = arith.constant 3.200000e+01 : f32
    %38 = vector.broadcast %cst_13 : f32 to vector<16x1xf32>
    %39 = arith.divf %37, %38 : vector<16x1xf32>
    %cst_14 = arith.constant 9.99999974E-6 : f32
    %40 = vector.broadcast %cst_14 : f32 to vector<16x1xf32>
    %41 = arith.addf %39, %40 : vector<16x1xf32>
    %42 = math.rsqrt %41 : vector<16x1xf32>
    %43 = vector.broadcast %42 : vector<16x1xf32> to vector<16x32xf32>
    %44 = arith.mulf %34, %43 : vector<16x32xf32>
    %45 = vector.broadcast %10 : vector<1x32xf32> to vector<16x32xf32>
    %46 = arith.mulf %44, %45 : vector<16x32xf32>
    %47 = vector.broadcast %11 : vector<1x32xf32> to vector<16x32xf32>
    %48 = arith.addf %46, %47 : vector<16x32xf32>
    %cst_15 = arith.constant dense<0.000000e+00> : vector<16x96xf32>
    %49 = tpu.matmul %48, %5, %cst_15 {dimension_numbers = #tpu.dot_dimension_numbers<[1], [0], [0], [1], [0, 0, 1, 1], [], []>} : vector<16x32xf32>, vector<32x96xf32>, vector<16x96xf32> -> vector<16x96xf32>
    %50 = vector.broadcast %16 : vector<1x96xf32> to vector<16x96xf32>
    %51 = arith.addf %49, %50 : vector<16x96xf32>
    %52 = vector.extract_strided_slice %51 {offsets = [0, 0], sizes = [16, 32], strides = [1, 1]} : vector<16x96xf32> to vector<16x32xf32>
    %53 = vector.extract_strided_slice %51 {offsets = [0, 32], sizes = [16, 32], strides = [1, 1]} : vector<16x96xf32> to vector<16x32xf32>
    %54 = vector.extract_strided_slice %51 {offsets = [0, 64], sizes = [16, 32], strides = [1, 1]} : vector<16x96xf32> to vector<16x32xf32>
    %55 = tpu.iota {dimensions = array<i32: 0>} : vector<16x16xi32>
    %c2_i32 = arith.constant 2 : i32
    %c0_i32 = arith.constant 0 : i32
    %56 = arith.cmpi eq, %c2_i32, %c0_i32 : i32
    %c1_i32 = arith.constant 1 : i32
    %57 = arith.select %56, %c1_i32, %c2_i32 : i32
    %58 = vector.broadcast %57 : i32 to vector<16x16xi32>
    %59 = arith.remsi %55, %58 : vector<16x16xi32>
    %c0_i32_16 = arith.constant 0 : i32
    %60 = vector.broadcast %c0_i32_16 : i32 to vector<16x16xi32>
    %61 = arith.cmpi ne, %59, %60 : vector<16x16xi32>
    %c0_i32_17 = arith.constant 0 : i32
    %62 = vector.broadcast %c0_i32_17 : i32 to vector<16x16xi32>
    %63 = arith.cmpi slt, %59, %62 : vector<16x16xi32>
    %c0_i32_18 = arith.constant 0 : i32
    %64 = arith.cmpi slt, %57, %c0_i32_18 : i32
    %65 = vector.broadcast %64 : i1 to vector<16x16xi1>
    %66 = vector.broadcast %65 : vector<16x16xi1> to vector<16x16xi1>
    %67 = arith.xori %63, %66 : vector<16x16xi1>
    %68 = arith.andi %67, %61 : vector<16x16xi1>
    %69 = vector.broadcast %57 : i32 to vector<16x16xi32>
    %70 = arith.addi %59, %69 : vector<16x16xi32>
    %71 = arith.select %68, %70, %59 : vector<16x16xi1>, vector<16x16xi32>
    %72 = tpu.iota {dimensions = array<i32: 1>} : vector<16x16xi32>
    %c2_i32_19 = arith.constant 2 : i32
    %c0_i32_20 = arith.constant 0 : i32
    %73 = arith.cmpi eq, %c2_i32_19, %c0_i32_20 : i32
    %c1_i32_21 = arith.constant 1 : i32
    %74 = arith.select %73, %c1_i32_21, %c2_i32_19 : i32
    %75 = vector.broadcast %74 : i32 to vector<16x16xi32>
    %76 = arith.remsi %72, %75 : vector<16x16xi32>
    %c0_i32_22 = arith.constant 0 : i32
    %77 = vector.broadcast %c0_i32_22 : i32 to vector<16x16xi32>
    %78 = arith.cmpi ne, %76, %77 : vector<16x16xi32>
    %c0_i32_23 = arith.constant 0 : i32
    %79 = vector.broadcast %c0_i32_23 : i32 to vector<16x16xi32>
    %80 = arith.cmpi slt, %76, %79 : vector<16x16xi32>
    %c0_i32_24 = arith.constant 0 : i32
    %81 = arith.cmpi slt, %74, %c0_i32_24 : i32
    %82 = vector.broadcast %81 : i1 to vector<16x16xi1>
    %83 = vector.broadcast %82 : vector<16x16xi1> to vector<16x16xi1>
    %84 = arith.xori %80, %83 : vector<16x16xi1>
    %85 = arith.andi %84, %78 : vector<16x16xi1>
    %86 = vector.broadcast %74 : i32 to vector<16x16xi32>
    %87 = arith.addi %76, %86 : vector<16x16xi32>
    %88 = arith.select %85, %87, %76 : vector<16x16xi1>, vector<16x16xi32>
    %89 = arith.cmpi eq, %71, %88 : vector<16x16xi32>
    %cst_25 = arith.constant 0.000000e+00 : f32
    %cst_26 = arith.constant -1.000000e+09 : f32
    %90 = vector.broadcast %cst_25 : f32 to vector<16x16xf32>
    %91 = vector.broadcast %cst_26 : f32 to vector<16x16xf32>
    %92 = arith.select %89, %90, %91 : vector<16x16xi1>, vector<16x16xf32>
    %cst_27 = arith.constant dense<0.000000e+00> : vector<16x16xf32>
    %93 = tpu.matmul %52, %53, %cst_27 {dimension_numbers = #tpu.dot_dimension_numbers<[1], [1], [0], [0], [0, 0, 1, 0], [], []>} : vector<16x32xf32>, vector<16x32xf32>, vector<16x16xf32> -> vector<16x16xf32>
    %94 = arith.addf %93, %92 : vector<16x16xf32>
    %cst_28 = arith.constant dense<0xFF800000> : vector<16xf32>
    %95 = vector.multi_reduction <maximumf>, %94, %cst_28 [1] : vector<16x16xf32> to vector<16xf32>
    %96 = vector.shape_cast %95 : vector<16xf32> to vector<16x1xf32>
    %97 = vector.broadcast %96 : vector<16x1xf32> to vector<16x16xf32>
    %98 = arith.subf %94, %97 : vector<16x16xf32>
    %99 = math.exp %98 : vector<16x16xf32>
    %cst_29 = arith.constant dense<0.000000e+00> : vector<16xf32>
    %100 = vector.multi_reduction <add>, %99, %cst_29 [1] : vector<16x16xf32> to vector<16xf32>
    %101 = vector.shape_cast %100 : vector<16xf32> to vector<16x1xf32>
    %102 = tpu.reciprocal %101 {approx = true} : vector<16x1xf32> -> vector<16x1xf32>
    %103 = vector.broadcast %102 : vector<16x1xf32> to vector<16x16xf32>
    %104 = arith.mulf %99, %103 : vector<16x16xf32>
    %cst_30 = arith.constant dense<0.000000e+00> : vector<16x32xf32>
    %105 = tpu.matmul %104, %54, %cst_30 {dimension_numbers = #tpu.dot_dimension_numbers<[1], [0], [0], [1], [0, 0, 1, 1], [], []>} : vector<16x16xf32>, vector<16x32xf32>, vector<16x32xf32> -> vector<16x32xf32>
    %cst_31 = arith.constant dense<0.000000e+00> : vector<16x32xf32>
    %106 = tpu.matmul %105, %6, %cst_31 {dimension_numbers = #tpu.dot_dimension_numbers<[1], [0], [0], [1], [0, 0, 1, 1], [], []>} : vector<16x32xf32>, vector<32x32xf32>, vector<16x32xf32> -> vector<16x32xf32>
    %107 = vector.broadcast %14 : vector<1x32xf32> to vector<16x32xf32>
    %108 = arith.addf %106, %107 : vector<16x32xf32>
    %109 = arith.addf %28, %108 : vector<16x32xf32>
    %cst_32 = arith.constant dense<0.000000e+00> : vector<16xf32>
    %110 = vector.multi_reduction <add>, %109, %cst_32 [1] : vector<16x32xf32> to vector<16xf32>
    %111 = vector.shape_cast %110 : vector<16xf32> to vector<16x1xf32>
    %cst_33 = arith.constant 3.200000e+01 : f32
    %112 = vector.broadcast %cst_33 : f32 to vector<16x1xf32>
    %113 = arith.divf %111, %112 : vector<16x1xf32>
    %114 = vector.broadcast %113 : vector<16x1xf32> to vector<16x32xf32>
    %115 = arith.subf %109, %114 : vector<16x32xf32>
    %116 = arith.mulf %115, %115 : vector<16x32xf32>
    %cst_34 = arith.constant dense<0.000000e+00> : vector<16xf32>
    %117 = vector.multi_reduction <add>, %116, %cst_34 [1] : vector<16x32xf32> to vector<16xf32>
    %118 = vector.shape_cast %117 : vector<16xf32> to vector<16x1xf32>
    %cst_35 = arith.constant 3.200000e+01 : f32
    %119 = vector.broadcast %cst_35 : f32 to vector<16x1xf32>
    %120 = arith.divf %118, %119 : vector<16x1xf32>
    %cst_36 = arith.constant 9.99999974E-6 : f32
    %121 = vector.broadcast %cst_36 : f32 to vector<16x1xf32>
    %122 = arith.addf %120, %121 : vector<16x1xf32>
    %123 = math.rsqrt %122 : vector<16x1xf32>
    %124 = vector.broadcast %123 : vector<16x1xf32> to vector<16x32xf32>
    %125 = arith.mulf %115, %124 : vector<16x32xf32>
    %126 = vector.broadcast %12 : vector<1x32xf32> to vector<16x32xf32>
    %127 = arith.mulf %125, %126 : vector<16x32xf32>
    %128 = vector.broadcast %13 : vector<1x32xf32> to vector<16x32xf32>
    %129 = arith.addf %127, %128 : vector<16x32xf32>
    %cst_37 = arith.constant dense<0.000000e+00> : vector<16x64xf32>
    %130 = tpu.matmul %129, %7, %cst_37 {dimension_numbers = #tpu.dot_dimension_numbers<[1], [0], [0], [1], [0, 0, 1, 1], [], []>} : vector<16x32xf32>, vector<32x64xf32>, vector<16x64xf32> -> vector<16x64xf32>
    %131 = vector.broadcast %17 : vector<1x64xf32> to vector<16x64xf32>
    %132 = arith.addf %130, %131 : vector<16x64xf32>
    %cst_38 = arith.constant 0.000000e+00 : f32
    %133 = vector.broadcast %cst_38 : f32 to vector<16x64xf32>
    %134 = arith.maximumf %132, %133 : vector<16x64xf32>
    %cst_39 = arith.constant dense<0.000000e+00> : vector<16x32xf32>
    %135 = tpu.matmul %134, %8, %cst_39 {dimension_numbers = #tpu.dot_dimension_numbers<[1], [0], [0], [1], [0, 0, 1, 1], [], []>} : vector<16x64xf32>, vector<64x32xf32>, vector<16x32xf32> -> vector<16x32xf32>
    %136 = vector.broadcast %15 : vector<1x32xf32> to vector<16x32xf32>
    %137 = arith.addf %135, %136 : vector<16x32xf32>
    %138 = arith.addf %109, %137 : vector<16x32xf32>
    %cst_40 = arith.constant 0.000000e+00 : f32
    %139 = vector.broadcast %cst_40 : f32 to vector<16x32xf32>
    %140 = tpu.concatenate %138, %24, %25, %139 in 1 : vector<16x32xf32>, vector<16x32xf32>, vector<16x32xf32>, vector<16x32xf32> -> vector<16x128xf32>
    %c0_41 = arith.constant 0 : index
    %c0_42 = arith.constant 0 : index
    %141 = vector.load %arg2[%c0_41, %c0_42] : memref<16x128xf32, #tpu.memory_space<vmem>>, vector<16x128xf32>
    tpu.vector_store %arg2[%c0_41, %c0_42], %140 {strides = array<i32>} : memref<16x128xf32, #tpu.memory_space<vmem>>, vector<16x128xf32>,
    return
  }
}

</mosaic_0001>

<llo_original>
// kernel: tremo_forward.1
$region0: #{tremo_forward.1}
  #allocation0 [shape = 'u32[]', space=smem, size = 0x4, offset = 0x4, fixed_abs, tag = 'smem constant byte address 0x4 - core index']
  #allocation1 [shape = 'u32[144,128]{1,0:T(1,128)}', space=vmem, size = 0x12000, scoped, tag = 'internal scratch']
  %s0 = inlined_call_operand.vmem [shape: f32[16,128], index: 0, kind: input, shape index: {}]
  %s1 = inlined_call_operand.hbm [shape: f32[200,128], index: 1, kind: input, shape index: {}]
  %s2 = inlined_call_operand.vmem [shape: f32[16,128], index: 2, kind: output, shape index: {}]
  %s3 = sld [smem:[#allocation0]]
  $region22: #{tremo_forward.1} parent=0
    _
  %s5 = ssub.s32 1, %s3
  %s6 = scalar_select 0, %s5, %s3
  $region1: #{tremo_forward.1} parent=0
    #allocation2 [shape = 'u8[102400]{0}', space=vmem, size = 0x19000, scoped, tag = 'input window, operand 1, single buffered']
    #allocation3 [shape = 's32[1]{0}', space=sflag, size = 0x4, scoped, tag = 'scoped memory for tremo_forward.1']
    %7 = vsyncpa [#allocation3], 0
    // Predicated region
    $region2: #{tremo_forward.1} parent=1 // pred_check
      _
    $region3: #{tremo_forward.1} parent=1 // pred_check_branch
      %9 = sbr.rel (0) target = $region5
    $region4: #{tremo_forward.1} parent=1 // pred_region
      _
    $region5: #{tremo_forward.1} parent=1 // pred_fallthru
      _
    // Predicated region
    $region6: #{tremo_forward.1} parent=1 // pred_check
      _
    $region7: #{tremo_forward.1} parent=1 // pred_check_branch
      %11 = sbr.rel (0) target = $region9
    $region8: #{tremo_forward.1} parent=1 // pred_region
      %s13 = ssub.s32 3200, 3200
      %14 = vsyncadd [#allocation3], %s13
      %s15 = sshll.u32 [#allocation2], 4
      %s16 = int_to_ptr.vmem [resolvable:$true] %s15
      %21 = dma.hbm_to_vmem [thread:$0]  %s1, 3200, %s16, [#allocation3], 128, 128, 8
    $region9: #{tremo_forward.1} parent=1 // pred_fallthru
      _
    // Predicated region
    $region10: #{tremo_forward.1} parent=1 // pred_check
      _
    $region11: #{tremo_forward.1} parent=1 // pred_check_branch
      %23 = sbr.rel (0) target = $region13
    $region12: #{tremo_forward.1} parent=1 // pred_region
      %24 = dma.done [#allocation3], 3200
    $region13: #{tremo_forward.1} parent=1 // pred_fallthru
      _
    %v25 = vld [vmem:[%s0] sm:$0xff]
    %v26 = vld [vmem:[%s0 + $0x8] sm:$0xff]
    %v27 = vcvt.f32.s32.to.zero.pseudo %v25
    %v28 = vcvt.f32.s32.to.zero.pseudo %v26
    %v29 = vld [vmem:[#allocation2 + $0xb8] sm:$0xff]
    %v30 = vld [vmem:[#allocation2 + $0xc0] sm:$0xff]
    %v31 = vld [vmem:[#allocation2] sm:$0xff]
    %v32 = vld [vmem:[#allocation2 + $0x8] sm:$0xff]
    %v33 = vld [vmem:[#allocation2 + $0x10] sm:$0xff]
    %v34 = vld [vmem:[#allocation2 + $0x18] sm:$0xff]
    %v35 = vld [vmem:[#allocation2 + $0x20] sm:$0xff]
    %v36 = vld [vmem:[#allocation2 + $0x28] sm:$0xff]
    %v37 = vld [vmem:[#allocation2 + $0x30] sm:$0xff]
    %v38 = vld [vmem:[#allocation2 + $0x38] sm:$0xff]
    %v39 = vld [vmem:[#allocation2 + $0x40] sm:$0xff]
    %v40 = vld [vmem:[#allocation2 + $0x48] sm:$0xff]
    %v41 = vld [vmem:[#allocation2 + $0x50] sm:$0xff]
    %v42 = vld [vmem:[#allocation2 + $0x58] sm:$0xff]
    %v43 = vld [vmem:[#allocation2 + $0x60] sm:$0xff]
    %v44 = vld [vmem:[#allocation2 + $0x68] sm:$0xff]
    %v45 = vld [vmem:[#allocation2 + $0x70] sm:$0xff]
    %v46 = vld [vmem:[#allocation2 + $0x78] sm:$0xff]
    %v47 = vld [vmem:[#allocation2 + $0x80] sm:$0xff]
    %v48 = vld [vmem:[#allocation2 + $0x88] sm:$0xff]
    %v49 = vld [vmem:[#allocation2 + $0x90] sm:$0xff]
    %v50 = vld [vmem:[#allocation2 + $0x98] sm:$0xff]
    %v51 = vld [vmem:[#allocation2 + $0xa0] sm:$0xff]
    %v52 = vld [vmem:[#allocation2 + $0xa8] sm:$0xff]
    %v53 = vld [vmem:[#allocation2 + $0xb0] sm:$0xff]
    %v54 = vlaneseq
    %v55 = vand.u32 %v54, 127
    %56 = vset.pattern.permute.xlu0 32
    %57 = vperm.xlu0 %56, %v27
    %v58 = vpop.permute.xlu0 %57
    %59 = vset.pattern.permute.xlu0 32
    %60 = vperm.xlu0 %59, %v28
    %v61 = vpop.permute.xlu0 %60
    %vm62 = vcmp.eq.s32.totalorder %v55, %v58
    %vm63 = vcmp.eq.s32.totalorder %v55, %v61
    %v64 = vsel %vm62, 1, 0
    %v65 = vsel %vm63, 1, 0
    %v66 = vcvt.s32.f32 %v64
    %v67 = vcvt.s32.f32 %v65
    %vm68 = vcmask 130048
    %v70 = vsel %vm68, %v66, 0
    %v73 = vsel %vm68, %v67, 0
    %75 = vmatprep.subr.mxu0 0.0
    %76 = vmatpush1.msra.mxu0 0.0
    %77 = vmatprep.subr.mxu0 0.0
    %78 = vmatpush1.msra.mxu0 0.0
    %79 = vmatprep.subr.mxu0 0.0
    %80 = vmatpush1.msra.mxu0 0.0
    %81 = vmatprep.subr.mxu0 0.0
    %82 = vmatpush1.msra.mxu0 0.0
    %83 = vmatprep.subr.mxu0 0.0
    %84 = vmatpush1.msra.mxu0 0.0
    %85 = vmatprep.subr.mxu0 0.0
    %86 = vmatpush1.msra.mxu0 0.0
    %87 = vmatprep.subr.mxu0 0.0
    %88 = vmatpush1.msra.mxu0 0.0
    %89 = vmatprep.subr.mxu0 0.0
    %90 = vmatpush1.msra.mxu0 0.0
    %91 = vmatprep.subr.mxu0 0.0
    %92 = vmatpush1.msra.mxu0 0.0
    %93 = vmatprep.subr.mxu0 0.0
    %94 = vmatpush1.msra.mxu0 0.0
    %95 = vmatprep.subr.mxu0 0.0
    %96 = vmatpush1.msra.mxu0 0.0
    %97 = vmatprep.subr.mxu0 0.0
    %98 = vmatpush1.msra.mxu0 0.0
    %99 = vmatprep.subr.mxu0 0.0
    %100 = vmatpush1.msra.mxu0 0.0
    %101 = vmatprep.subr.mxu0 0.0
    %102 = vmatpush1.msra.mxu0 0.0
    %103 = vmatprep.subr.mxu0 0.0
    %104 = vmatpush1.msra.mxu0 %v32
    %105 = vmatprep.subr.mxu0 0.0
    %106 = vmatpush1.msra.mxu0 %v31
    %107 = vmatprep.subr.mxu0 0.0
    %108 = vmatpush2.msra.mxu0 0.0
    %109 = vmatprep.subr.mxu0 0.0
    %110 = vmatpush2.msra.mxu0 0.0
    %111 = vmatprep.subr.mxu0 0.0
    %112 = vmatpush2.msra.mxu0 0.0
    %113 = vmatprep.subr.mxu0 0.0
    %114 = vmatpush2.msra.mxu0 0.0
    %115 = vmatprep.subr.mxu0 0.0
    %116 = vmatpush2.msra.mxu0 0.0
    %117 = vmatprep.subr.mxu0 0.0
    %118 = vmatpush2.msra.mxu0 0.0
    %119 = vmatprep.subr.mxu0 0.0
    %120 = vmatpush2.msra.mxu0 0.0
    %121 = vmatprep.subr.mxu0 0.0
    %122 = vmatpush2.msra.mxu0 0.0
    %123 = vmatprep.subr.mxu0 0.0
    %124 = vmatpush2.msra.mxu0 0.0
    %125 = vmatprep.subr.mxu0 0.0
    %126 = vmatpush2.msra.mxu0 0.0
    %127 = vmatprep.subr.mxu0 0.0
    %128 = vmatpush2.msra.mxu0 0.0
    %129 = vmatprep.subr.mxu0 0.0
    %130 = vmatpush2.msra.mxu0 0.0
    %131 = vmatprep.subr.mxu0 0.0
    %132 = vmatpush2.msra.mxu0 0.0
    %133 = vmatprep.subr.mxu0 0.0
    %134 = vmatpush2.msra.mxu0 0.0
    %135 = vmatprep.subr.mxu0 0.0
    %136 = vmatpush2.msra.mxu0 0.0
    %137 = vmatprep.subr.mxu0 0.0
    %138 = vmatpush2.msra.mxu0 0.0
    %139 = vmatprep.mubr.f32.mxu0 0.0
    %140 = vmatmul.mubr.f32.gmra.mxu0 %v70
    %v141 = vpop.f32.mrf.mxu0
    %v142 = vadd.f32 0.0, %v141
    %v143 = vpop.f32.mrf.mxu0
    %144 = vmatprep.mubr.f32.mxu0 0.0
    %145 = vmatmul.mubr.f32.gmra.mxu0 %v73
    %v146 = vpop.f32.mrf.mxu0
    %v147 = vadd.f32 0.0, %v146
    %v148 = vpop.f32.mrf.mxu0
    %149 = vdwg.mxu0
    %152 = vrot.lane.b32.xlu0 %v25, 32
    %v153 = vpop.permute.xlu0 %152
    %154 = vrot.lane.b32.xlu0 %v26, 32
    %v155 = vpop.permute.xlu0 %154
    %v158 = vmul.f32 %v142, %v153
    %v159 = vmul.f32 %v147, %v155
    %162 = vrot.lane.b32.xlu0 %v158, 96
    %v163 = vpop.permute.xlu0 %162
    %164 = vrot.lane.b32.xlu0 %v159, 96
    %v165 = vpop.permute.xlu0 %164
    %v168 = vadd.f32 %v142, %v163
    %v169 = vadd.f32 %v147, %v165
    %v170 = vadd.f32 %v168, %v29
    %v171 = vadd.f32 %v169, %v30
    %vm172 = vcmask 261120
    %v173 = vsel %vm172, %v170, 0.0
    %174 = vadd.xlane.f32.xlu0 %v173
    %v175 = vpop.xlane.xlu0 %174
    %v176 = vsel %vm172, %v171, 0.0
    %177 = vadd.xlane.f32.xlu0 %v176
    %v178 = vpop.xlane.xlu0 %177
    %v179 = vrcp.pop 32.0
    %v180 = vmul.f32 %v175, %v179
    %v181 = vmul.f32 %v178, %v179
    %v182 = vsub.f32 %v170, %v180
    %v183 = vsub.f32 %v171, %v181
    %v184 = vmul.f32 %v182, %v182
    %v185 = vmul.f32 %v183, %v183
    %v186 = vsel %vm172, %v184, 0.0
    %187 = vadd.xlane.f32.xlu0 %v186
    %v188 = vpop.xlane.xlu0 %187
    %v189 = vsel %vm172, %v185, 0.0
    %190 = vadd.xlane.f32.xlu0 %v189
    %v191 = vpop.xlane.xlu0 %190
    %v192 = vmul.f32 %v188, %v179
    %v193 = vmul.f32 %v191, %v179
    %v194 = vadd.f32 %v192, 1e-05
    %v195 = vadd.f32 %v193, 1e-05
    %v196 = vrsqrt.pop %v194
    %v197 = vrsqrt.pop %v195
    %v198 = vmul.f32 %v182, %v196
    %v199 = vmul.f32 %v183, %v197
    %v200 = vlaneseq
    %v201 = vshrl.u32 %v200, 7
    %v202 = vsub.s32 0, %v201
    %v203 = vrot.slane %v53, %v202
    %v204 = vmul.f32 %v198, %v203
    %v205 = vmul.f32 %v199, %v203
    %v206 = vlaneseq
    %v207 = vshrl.u32 %v206, 7
    %v208 = vsub.s32 1, %v207
    %v209 = vrot.slane %v53, %v208
    %v210 = vadd.f32 %v204, %v209
    %v211 = vadd.f32 %v205, %v209
    %v212 = vlaneseq
    %v213 = vshrl.u32 %v212, 7
    %v214 = vsub.s32 6, %v213
    %v215 = vrot.slane %v53, %v214
    %v217 = vsel %vm172, %v210, 0
    %v220 = vsel %vm172, %v211, 0
    %222 = vmatprep.subr.mxu0 0.0
    %223 = vmatpush1.msra.mxu0 0.0
    %224 = vmatprep.subr.mxu0 0.0
    %225 = vmatpush1.msra.mxu0 0.0
    %226 = vmatprep.subr.mxu0 0.0
    %227 = vmatpush1.msra.mxu0 0.0
    %228 = vmatprep.subr.mxu0 0.0
    %229 = vmatpush1.msra.mxu0 0.0
    %230 = vmatprep.subr.mxu0 0.0
    %231 = vmatpush1.msra.mxu0 0.0
    %232 = vmatprep.subr.mxu0 0.0
    %233 = vmatpush1.msra.mxu0 0.0
    %234 = vmatprep.subr.mxu0 0.0
    %235 = vmatpush1.msra.mxu0 0.0
    %236 = vmatprep.subr.mxu0 0.0
    %237 = vmatpush1.msra.mxu0 0.0
    %238 = vmatprep.subr.mxu0 0.0
    %239 = vmatpush1.msra.mxu0 0.0
    %240 = vmatprep.subr.mxu0 0.0
    %241 = vmatpush1.msra.mxu0 0.0
    %242 = vmatprep.subr.mxu0 0.0
    %243 = vmatpush1.msra.mxu0 0.0
    %244 = vmatprep.subr.mxu0 0.0
    %245 = vmatpush1.msra.mxu0 0.0
    %246 = vmatprep.subr.mxu0 0.0
    %247 = vmatpush1.msra.mxu0 %v36
    %248 = vmatprep.subr.mxu0 0.0
    %249 = vmatpush1.msra.mxu0 %v35
    %250 = vmatprep.subr.mxu0 0.0
    %251 = vmatpush1.msra.mxu0 %v34
    %252 = vmatprep.subr.mxu0 0.0
    %253 = vmatpush1.msra.mxu0 %v33
    %254 = vmatprep.subr.mxu0 0.0
    %255 = vmatpush2.msra.mxu0 0.0
    %256 = vmatprep.subr.mxu0 0.0
    %257 = vmatpush2.msra.mxu0 0.0
    %258 = vmatprep.subr.mxu0 0.0
    %259 = vmatpush2.msra.mxu0 0.0
    %260 = vmatprep.subr.mxu0 0.0
    %261 = vmatpush2.msra.mxu0 0.0
    %262 = vmatprep.subr.mxu0 0.0
    %263 = vmatpush2.msra.mxu0 0.0
    %264 = vmatprep.subr.mxu0 0.0
    %265 = vmatpush2.msra.mxu0 0.0
    %266 = vmatprep.subr.mxu0 0.0
    %267 = vmatpush2.msra.mxu0 0.0
    %268 = vmatprep.subr.mxu0 0.0
    %269 = vmatpush2.msra.mxu0 0.0
    %270 = vmatprep.subr.mxu0 0.0
    %271 = vmatpush2.msra.mxu0 0.0
    %272 = vmatprep.subr.mxu0 0.0
    %273 = vmatpush2.msra.mxu0 0.0
    %274 = vmatprep.subr.mxu0 0.0
    %275 = vmatpush2.msra.mxu0 0.0
    %276 = vmatprep.subr.mxu0 0.0
    %277 = vmatpush2.msra.mxu0 0.0
    %278 = vmatprep.subr.mxu0 0.0
    %279 = vmatpush2.msra.mxu0 0.0
    %280 = vmatprep.subr.mxu0 0.0
    %281 = vmatpush2.msra.mxu0 0.0
    %282 = vmatprep.subr.mxu0 0.0
    %283 = vmatpush2.msra.mxu0 0.0
    %284 = vmatprep.subr.mxu0 0.0
    %285 = vmatpush2.msra.mxu0 0.0
    %286 = vmatprep.mubr.f32.mxu0 0.0
    %287 = vmatmul.mubr.f32.gmra.mxu0 %v217
    %v288 = vpop.f32.mrf.mxu0
    %v289 = vadd.f32 %v215, %v288
    %v290 = vpop.f32.mrf.mxu0
    %291 = vmatprep.mubr.f32.mxu0 0.0
    %292 = vmatmul.mubr.f32.gmra.mxu0 %v220
    %v293 = vpop.f32.mrf.mxu0
    %v294 = vadd.f32 %v215, %v293
    %v295 = vpop.f32.mrf.mxu0
    %296 = vdwg.mxu0
    %v297 = vlaneseq
    %v298 = vshrl.u32 %v297, 7
    %v299 = vadd.s32 %v298, 8
    %vm300 = vcmp.lt.s32.totalorder %v298, 0
    %v301 = vsub.s32 0, %v298
    %v302 = vsel %vm300, %v301, %v298
    %v303 = vshrl.u32 %v302, 1
    %v304 = vand.u32 %v302, 1
    %v305 = vsub.s32 0, %v304
    %v306 = vsel %vm300, %v305, %v304
    %vm307 = vcmp.lt.s32.totalorder %v299, 0
    %v308 = vsub.s32 0, %v299
    %v309 = vsel %vm307, %v308, %v299
    %v310 = vshrl.u32 %v309, 1
    %v311 = vand.u32 %v309, 1
    %v312 = vsub.s32 0, %v311
    %v313 = vsel %vm307, %v312, %v311
    %vm314 = vcmp.ne.s32.totalorder %v306, 0
    %vm315 = vcmp.ne.s32.totalorder %v313, 0
    %vm316 = vcmp.lt.s32.totalorder %v306, 0
    %vm317 = vcmp.lt.s32.totalorder %v313, 0
    %vm318 = vmand %vm316, %vm314
    %vm319 = vmand %vm317, %vm315
    %v320 = vadd.s32 %v306, 2
    %v321 = vadd.s32 %v313, 2
    %v322 = vsel %vm318, %v320, %v306
    %v323 = vsel %vm319, %v321, %v313
    %vm324 = vcmp.lt.s32.totalorder %v55, 0
    %v325 = vsub.s32 0, %v55
    %v326 = vsel %vm324, %v325, %v55
    %v327 = vshrl.u32 %v326, 1
    %v328 = vand.u32 %v326, 1
    %v329 = vsub.s32 0, %v328
    %v330 = vsel %vm324, %v329, %v328
    %vm331 = vcmp.ne.s32.totalorder %v330, 0
    %vm332 = vcmp.lt.s32.totalorder %v330, 0
    %vm333 = vmand %vm332, %vm331
    %v334 = vadd.s32 %v330, 2
    %v335 = vsel %vm333, %v334, %v330
    %vm336 = vcmp.eq.s32.totalorder %v322, %v335
    %vm337 = vcmp.eq.s32.totalorder %v323, %v335
    %v338 = vsel %vm336, 0.0, -1e+09
    %v339 = vsel %vm337, 0.0, -1e+09
    %342 = vrot.lane.b32.xlu0 %v289, 96
    %v343 = vpop.permute.xlu0 %342
    %344 = vrot.lane.b32.xlu0 %v294, 96
    %v345 = vpop.permute.xlu0 %344
    %v346 = vsel %vm172, %v289, 0
    %v348 = vsel %vm172, %v294, 0
    %v350 = vsel %vm172, %v343, 0
    %v352 = vsel %vm172, %v345, 0
    %354 = vmatprep.subr.mxu0 0.0
    %355 = vmatpush1.xpose.msra.mxu0 0.0
    %356 = vmatprep.subr.mxu0 0.0
    %357 = vmatpush1.xpose.msra.mxu0 0.0
    %358 = vmatprep.subr.mxu0 0.0
    %359 = vmatpush1.xpose.msra.mxu0 0.0
    %360 = vmatprep.subr.mxu0 0.0
    %361 = vmatpush1.xpose.msra.mxu0 0.0
    %362 = vmatprep.subr.mxu0 0.0
    %363 = vmatpush1.xpose.msra.mxu0 0.0
    %364 = vmatprep.subr.mxu0 0.0
    %365 = vmatpush1.xpose.msra.mxu0 0.0
    %366 = vmatprep.subr.mxu0 0.0
    %367 = vmatpush1.xpose.msra.mxu0 0.0
    %368 = vmatprep.subr.mxu0 0.0
    %369 = vmatpush1.xpose.msra.mxu0 0.0
    %370 = vmatprep.subr.mxu0 0.0
    %371 = vmatpush1.xpose.msra.mxu0 0.0
    %372 = vmatprep.subr.mxu0 0.0
    %373 = vmatpush1.xpose.msra.mxu0 0.0
    %374 = vmatprep.subr.mxu0 0.0
    %375 = vmatpush1.xpose.msra.mxu0 0.0
    %376 = vmatprep.subr.mxu0 0.0
    %377 = vmatpush1.xpose.msra.mxu0 0.0
    %378 = vmatprep.subr.mxu0 0.0
    %379 = vmatpush1.xpose.msra.mxu0 0.0
    %380 = vmatprep.subr.mxu0 0.0
    %381 = vmatpush1.xpose.msra.mxu0 0.0
    %382 = vmatprep.subr.mxu0 0.0
    %383 = vmatpush1.xpose.msra.mxu0 %v352
    %384 = vmatprep.subr.mxu0 0.0
    %385 = vmatpush1.xpose.msra.mxu0 %v350
    %386 = vmatprep.subr.mxu0 0.0
    %387 = vmatpush2.xpose.msra.mxu0 0.0
    %388 = vmatprep.subr.mxu0 0.0
    %389 = vmatpush2.xpose.msra.mxu0 0.0
    %390 = vmatprep.subr.mxu0 0.0
    %391 = vmatpush2.xpose.msra.mxu0 0.0
    %392 = vmatprep.subr.mxu0 0.0
    %393 = vmatpush2.xpose.msra.mxu0 0.0
    %394 = vmatprep.subr.mxu0 0.0
    %395 = vmatpush2.xpose.msra.mxu0 0.0
    %396 = vmatprep.subr.mxu0 0.0
    %397 = vmatpush2.xpose.msra.mxu0 0.0
    %398 = vmatprep.subr.mxu0 0.0
    %399 = vmatpush2.xpose.msra.mxu0 0.0
    %400 = vmatprep.subr.mxu0 0.0
    %401 = vmatpush2.xpose.msra.mxu0 0.0
    %402 = vmatprep.subr.mxu0 0.0
    %403 = vmatpush2.xpose.msra.mxu0 0.0
    %404 = vmatprep.subr.mxu0 0.0
    %405 = vmatpush2.xpose.msra.mxu0 0.0
    %406 = vmatprep.subr.mxu0 0.0
    %407 = vmatpush2.xpose.msra.mxu0 0.0
    %408 = vmatprep.subr.mxu0 0.0
    %409 = vmatpush2.xpose.msra.mxu0 0.0
    %410 = vmatprep.subr.mxu0 0.0
    %411 = vmatpush2.xpose.msra.mxu0 0.0
    %412 = vmatprep.subr.mxu0 0.0
    %413 = vmatpush2.xpose.msra.mxu0 0.0
    %414 = vmatprep.subr.mxu0 0.0
    %415 = vmatpush2.xpose.msra.mxu0 0.0
    %416 = vmatprep.subr.mxu0 0.0
    %417 = vmatpush2.xpose.msra.mxu0 0.0
    %418 = vmatprep.mubr.f32.mxu0 0.0
    %419 = vmatmul.mubr.f32.gmra.mxu0 %v346
    %v420 = vpop.f32.mrf.mxu0
    %v421 = vadd.f32 %v338, %v420
    %v422 = vpop.f32.mrf.mxu0
    %423 = vmatprep.mubr.f32.mxu0 0.0
    %424 = vmatmul.mubr.f32.gmra.mxu0 %v348
    %v425 = vpop.f32.mrf.mxu0
    %v426 = vadd.f32 %v339, %v425
    %v427 = vpop.f32.mrf.mxu0
    %428 = vdwg.mxu0
    %v429 = vsel %vm68, %v421, -inf
    %430 = vmax.xlane.f32.xlu0 %v429
    %v431 = vpop.xlane.xlu0 %430
    %v432 = vsel %vm68, %v426, -inf
    %433 = vmax.xlane.f32.xlu0 %v432
    %v434 = vpop.xlane.xlu0 %433
    %v435 = vsub.f32 %v421, %v431
    %v436 = vsub.f32 %v426, %v434
    %v437 = vmul.f32 %v435, 1.442695
    %v438 = vpow.pop %v437
    %v439 = vmul.f32 %v436, 1.442695
    %v440 = vpow.pop %v439
    %v441 = vsel %vm68, %v438, 0.0
    %442 = vadd.xlane.f32.xlu0 %v441
    %v443 = vpop.xlane.xlu0 %442
    %v444 = vsel %vm68, %v440, 0.0
    %445 = vadd.xlane.f32.xlu0 %v444
    %v446 = vpop.xlane.xlu0 %445
    %v447 = vrcp.pop %v443
    %v448 = vrcp.pop %v446
    %v449 = vmul.f32 %v438, %v447
    %v450 = vmul.f32 %v440, %v448
    %451 = vrot.lane.b32.xlu0 %v289, 64
    %v452 = vpop.permute.xlu0 %451
    %453 = vrot.lane.b32.xlu0 %v294, 64
    %v454 = vpop.permute.xlu0 %453
    %v458 = vsel %vm68, %v449, 0
    %v461 = vsel %vm68, %v450, 0
    %463 = vmatprep.subr.mxu0 0.0
    %464 = vmatpush1.msra.mxu0 0.0
    %465 = vmatprep.subr.mxu0 0.0
    %466 = vmatpush1.msra.mxu0 0.0
    %467 = vmatprep.subr.mxu0 0.0
    %468 = vmatpush1.msra.mxu0 0.0
    %469 = vmatprep.subr.mxu0 0.0
    %470 = vmatpush1.msra.mxu0 0.0
    %471 = vmatprep.subr.mxu0 0.0
    %472 = vmatpush1.msra.mxu0 0.0
    %473 = vmatprep.subr.mxu0 0.0
    %474 = vmatpush1.msra.mxu0 0.0
    %475 = vmatprep.subr.mxu0 0.0
    %476 = vmatpush1.msra.mxu0 0.0
    %477 = vmatprep.subr.mxu0 0.0
    %478 = vmatpush1.msra.mxu0 0.0
    %479 = vmatprep.subr.mxu0 0.0
    %480 = vmatpush1.msra.mxu0 0.0
    %481 = vmatprep.subr.mxu0 0.0
    %482 = vmatpush1.msra.mxu0 0.0
    %483 = vmatprep.subr.mxu0 0.0
    %484 = vmatpush1.msra.mxu0 0.0
    %485 = vmatprep.subr.mxu0 0.0
    %486 = vmatpush1.msra.mxu0 0.0
    %487 = vmatprep.subr.mxu0 0.0
    %488 = vmatpush1.msra.mxu0 0.0
    %489 = vmatprep.subr.mxu0 0.0
    %490 = vmatpush1.msra.mxu0 0.0
    %491 = vmatprep.subr.mxu0 0.0
    %492 = vmatpush1.msra.mxu0 %v454
    %493 = vmatprep.subr.mxu0 0.0
    %494 = vmatpush1.msra.mxu0 %v452
    %495 = vmatprep.subr.mxu0 0.0
    %496 = vmatpush2.msra.mxu0 0.0
    %497 = vmatprep.subr.mxu0 0.0
    %498 = vmatpush2.msra.mxu0 0.0
    %499 = vmatprep.subr.mxu0 0.0
    %500 = vmatpush2.msra.mxu0 0.0
    %501 = vmatprep.subr.mxu0 0.0
    %502 = vmatpush2.msra.mxu0 0.0
    %503 = vmatprep.subr.mxu0 0.0
    %504 = vmatpush2.msra.mxu0 0.0
    %505 = vmatprep.subr.mxu0 0.0
    %506 = vmatpush2.msra.mxu0 0.0
    %507 = vmatprep.subr.mxu0 0.0
    %508 = vmatpush2.msra.mxu0 0.0
    %509 = vmatprep.subr.mxu0 0.0
    %510 = vmatpush2.msra.mxu0 0.0
    %511 = vmatprep.subr.mxu0 0.0
    %512 = vmatpush2.msra.mxu0 0.0
    %513 = vmatprep.subr.mxu0 0.0
    %514 = vmatpush2.msra.mxu0 0.0
    %515 = vmatprep.subr.mxu0 0.0
    %516 = vmatpush2.msra.mxu0 0.0
    %517 = vmatprep.subr.mxu0 0.0
    %518 = vmatpush2.msra.mxu0 0.0
    %519 = vmatprep.subr.mxu0 0.0
    %520 = vmatpush2.msra.mxu0 0.0
    %521 = vmatprep.subr.mxu0 0.0
    %522 = vmatpush2.msra.mxu0 0.0
    %523 = vmatprep.subr.mxu0 0.0
    %524 = vmatpush2.msra.mxu0 0.0
    %525 = vmatprep.subr.mxu0 0.0
    %526 = vmatpush2.msra.mxu0 0.0
    %527 = vmatprep.mubr.f32.mxu0 0.0
    %528 = vmatmul.mubr.f32.gmra.mxu0 %v458
    %v529 = vpop.f32.mrf.mxu0
    %v530 = vadd.f32 0.0, %v529
    %v531 = vpop.f32.mrf.mxu0
    %532 = vmatprep.mubr.f32.mxu0 0.0
    %533 = vmatmul.mubr.f32.gmra.mxu0 %v461
    %v534 = vpop.f32.mrf.mxu0
    %v535 = vadd.f32 0.0, %v534
    %v536 = vpop.f32.mrf.mxu0
    %537 = vdwg.mxu0
    %v538 = vlaneseq
    %v539 = vshrl.u32 %v538, 7
    %v540 = vsub.s32 4, %v539
    %v541 = vrot.slane %v53, %v540
    %v543 = vsel %vm172, %v530, 0
    %v546 = vsel %vm172, %v535, 0
    %548 = vmatprep.subr.mxu0 0.0
    %549 = vmatpush1.msra.mxu0 0.0
    %550 = vmatprep.subr.mxu0 0.0
    %551 = vmatpush1.msra.mxu0 0.0
    %552 = vmatprep.subr.mxu0 0.0
    %553 = vmatpush1.msra.mxu0 0.0
    %554 = vmatprep.subr.mxu0 0.0
    %555 = vmatpush1.msra.mxu0 0.0
    %556 = vmatprep.subr.mxu0 0.0
    %557 = vmatpush1.msra.mxu0 0.0
    %558 = vmatprep.subr.mxu0 0.0
    %559 = vmatpush1.msra.mxu0 0.0
    %560 = vmatprep.subr.mxu0 0.0
    %561 = vmatpush1.msra.mxu0 0.0
    %562 = vmatprep.subr.mxu0 0.0
    %563 = vmatpush1.msra.mxu0 0.0
    %564 = vmatprep.subr.mxu0 0.0
    %565 = vmatpush1.msra.mxu0 0.0
    %566 = vmatprep.subr.mxu0 0.0
    %567 = vmatpush1.msra.mxu0 0.0
    %568 = vmatprep.subr.mxu0 0.0
    %569 = vmatpush1.msra.mxu0 0.0
    %570 = vmatprep.subr.mxu0 0.0
    %571 = vmatpush1.msra.mxu0 0.0
    %572 = vmatprep.subr.mxu0 0.0
    %573 = vmatpush1.msra.mxu0 %v40
    %574 = vmatprep.subr.mxu0 0.0
    %575 = vmatpush1.msra.mxu0 %v39
    %576 = vmatprep.subr.mxu0 0.0
    %577 = vmatpush1.msra.mxu0 %v38
    %578 = vmatprep.subr.mxu0 0.0
    %579 = vmatpush1.msra.mxu0 %v37
    %580 = vmatprep.subr.mxu0 0.0
    %581 = vmatpush2.msra.mxu0 0.0
    %582 = vmatprep.subr.mxu0 0.0
    %583 = vmatpush2.msra.mxu0 0.0
    %584 = vmatprep.subr.mxu0 0.0
    %585 = vmatpush2.msra.mxu0 0.0
    %586 = vmatprep.subr.mxu0 0.0
    %587 = vmatpush2.msra.mxu0 0.0
    %588 = vmatprep.subr.mxu0 0.0
    %589 = vmatpush2.msra.mxu0 0.0
    %590 = vmatprep.subr.mxu0 0.0
    %591 = vmatpush2.msra.mxu0 0.0
    %592 = vmatprep.subr.mxu0 0.0
    %593 = vmatpush2.msra.mxu0 0.0
    %594 = vmatprep.subr.mxu0 0.0
    %595 = vmatpush2.msra.mxu0 0.0
    %596 = vmatprep.subr.mxu0 0.0
    %597 = vmatpush2.msra.mxu0 0.0
    %598 = vmatprep.subr.mxu0 0.0
    %599 = vmatpush2.msra.mxu0 0.0
    %600 = vmatprep.subr.mxu0 0.0
    %601 = vmatpush2.msra.mxu0 0.0
    %602 = vmatprep.subr.mxu0 0.0
    %603 = vmatpush2.msra.mxu0 0.0
    %604 = vmatprep.subr.mxu0 0.0
    %605 = vmatpush2.msra.mxu0 0.0
    %606 = vmatprep.subr.mxu0 0.0
    %607 = vmatpush2.msra.mxu0 0.0
    %608 = vmatprep.subr.mxu0 0.0
    %609 = vmatpush2.msra.mxu0 0.0
    %610 = vmatprep.subr.mxu0 0.0
    %611 = vmatpush2.msra.mxu0 0.0
    %612 = vmatprep.mubr.f32.mxu0 0.0
    %613 = vmatmul.mubr.f32.gmra.mxu0 %v543
    %v614 = vpop.f32.mrf.mxu0
    %v615 = vadd.f32 %v541, %v614
    %v616 = vpop.f32.mrf.mxu0
    %617 = vmatprep.mubr.f32.mxu0 0.0
    %618 = vmatmul.mubr.f32.gmra.mxu0 %v546
    %v619 = vpop.f32.mrf.mxu0
    %v620 = vadd.f32 %v541, %v619
    %v621 = vpop.f32.mrf.mxu0
    %622 = vdwg.mxu0
    %v623 = vadd.f32 %v170, %v615
    %v624 = vadd.f32 %v171, %v620
    %v625 = vsel %vm172, %v623, 0.0
    %626 = vadd.xlane.f32.xlu0 %v625
    %v627 = vpop.xlane.xlu0 %626
    %v628 = vsel %vm172, %v624, 0.0
    %629 = vadd.xlane.f32.xlu0 %v628
    %v630 = vpop.xlane.xlu0 %629
    %v631 = vmul.f32 %v627, %v179
    %v632 = vmul.f32 %v630, %v179
    %v633 = vsub.f32 %v623, %v631
    %v634 = vsub.f32 %v624, %v632
    %v635 = vmul.f32 %v633, %v633
    %v636 = vmul.f32 %v634, %v634
    %v637 = vsel %vm172, %v635, 0.0
    %638 = vadd.xlane.f32.xlu0 %v637
    %v639 = vpop.xlane.xlu0 %638
    %v640 = vsel %vm172, %v636, 0.0
    %641 = vadd.xlane.f32.xlu0 %v640
    %v642 = vpop.xlane.xlu0 %641
    %v643 = vmul.f32 %v639, %v179
    %v644 = vmul.f32 %v642, %v179
    %v645 = vadd.f32 %v643, 1e-05
    %v646 = vadd.f32 %v644, 1e-05
    %v647 = vrsqrt.pop %v645
    %v648 = vrsqrt.pop %v646
    %v649 = vmul.f32 %v633, %v647
    %v650 = vmul.f32 %v634, %v648
    %v651 = vlaneseq
    %v652 = vshrl.u32 %v651, 7
    %v653 = vsub.s32 2, %v652
    %v654 = vrot.slane %v53, %v653
    %v655 = vmul.f32 %v649, %v654
    %v656 = vmul.f32 %v650, %v654
    %v657 = vlaneseq
    %v658 = vshrl.u32 %v657, 7
    %v659 = vsub.s32 3, %v658
    %v660 = vrot.slane %v53, %v659
    %v661 = vadd.f32 %v655, %v660
    %v662 = vadd.f32 %v656, %v660
    %v663 = vlaneseq
    %v664 = vshrl.u32 %v663, 7
    %v665 = vsub.s32 7, %v664
    %v666 = vrot.slane %v53, %v665
    %v668 = vsel %vm172, %v661, 0
    %v671 = vsel %vm172, %v662, 0
    %673 = vmatprep.subr.mxu0 0.0
    %674 = vmatpush1.msra.mxu0 0.0
    %675 = vmatprep.subr.mxu0 0.0
    %676 = vmatpush1.msra.mxu0 0.0
    %677 = vmatprep.subr.mxu0 0.0
    %678 = vmatpush1.msra.mxu0 0.0
    %679 = vmatprep.subr.mxu0 0.0
    %680 = vmatpush1.msra.mxu0 0.0
    %681 = vmatprep.subr.mxu0 0.0
    %682 = vmatpush1.msra.mxu0 0.0
    %683 = vmatprep.subr.mxu0 0.0
    %684 = vmatpush1.msra.mxu0 0.0
    %685 = vmatprep.subr.mxu0 0.0
    %686 = vmatpush1.msra.mxu0 0.0
    %687 = vmatprep.subr.mxu0 0.0
    %688 = vmatpush1.msra.mxu0 0.0
    %689 = vmatprep.subr.mxu0 0.0
    %690 = vmatpush1.msra.mxu0 0.0
    %691 = vmatprep.subr.mxu0 0.0
    %692 = vmatpush1.msra.mxu0 0.0
    %693 = vmatprep.subr.mxu0 0.0
    %694 = vmatpush1.msra.mxu0 0.0
    %695 = vmatprep.subr.mxu0 0.0
    %696 = vmatpush1.msra.mxu0 0.0
    %697 = vmatprep.subr.mxu0 0.0
    %698 = vmatpush1.msra.mxu0 %v44
    %699 = vmatprep.subr.mxu0 0.0
    %700 = vmatpush1.msra.mxu0 %v43
    %701 = vmatprep.subr.mxu0 0.0
    %702 = vmatpush1.msra.mxu0 %v42
    %703 = vmatprep.subr.mxu0 0.0
    %704 = vmatpush1.msra.mxu0 %v41
    %705 = vmatprep.subr.mxu0 0.0
    %706 = vmatpush2.msra.mxu0 0.0
    %707 = vmatprep.subr.mxu0 0.0
    %708 = vmatpush2.msra.mxu0 0.0
    %709 = vmatprep.subr.mxu0 0.0
    %710 = vmatpush2.msra.mxu0 0.0
    %711 = vmatprep.subr.mxu0 0.0
    %712 = vmatpush2.msra.mxu0 0.0
    %713 = vmatprep.subr.mxu0 0.0
    %714 = vmatpush2.msra.mxu0 0.0
    %715 = vmatprep.subr.mxu0 0.0
    %716 = vmatpush2.msra.mxu0 0.0
    %717 = vmatprep.subr.mxu0 0.0
    %718 = vmatpush2.msra.mxu0 0.0
    %719 = vmatprep.subr.mxu0 0.0
    %720 = vmatpush2.msra.mxu0 0.0
    %721 = vmatprep.subr.mxu0 0.0
    %722 = vmatpush2.msra.mxu0 0.0
    %723 = vmatprep.subr.mxu0 0.0
    %724 = vmatpush2.msra.mxu0 0.0
    %725 = vmatprep.subr.mxu0 0.0
    %726 = vmatpush2.msra.mxu0 0.0
    %727 = vmatprep.subr.mxu0 0.0
    %728 = vmatpush2.msra.mxu0 0.0
    %729 = vmatprep.subr.mxu0 0.0
    %730 = vmatpush2.msra.mxu0 0.0
    %731 = vmatprep.subr.mxu0 0.0
    %732 = vmatpush2.msra.mxu0 0.0
    %733 = vmatprep.subr.mxu0 0.0
    %734 = vmatpush2.msra.mxu0 0.0
    %735 = vmatprep.subr.mxu0 0.0
    %736 = vmatpush2.msra.mxu0 0.0
    %737 = vmatprep.mubr.f32.mxu0 0.0
    %738 = vmatmul.mubr.f32.gmra.mxu0 %v668
    %v739 = vpop.f32.mrf.mxu0
    %v740 = vadd.f32 %v666, %v739
    %v741 = vpop.f32.mrf.mxu0
    %742 = vmatprep.mubr.f32.mxu0 0.0
    %743 = vmatmul.mubr.f32.gmra.mxu0 %v671
    %v744 = vpop.f32.mrf.mxu0
    %v745 = vadd.f32 %v666, %v744
    %v746 = vpop.f32.mrf.mxu0
    %747 = vdwg.mxu0
    %v748 = vmax.f32 %v740, 0.0
    %v749 = vmax.f32 %v745, 0.0
    %v750 = vlaneseq
    %v751 = vshrl.u32 %v750, 7
    %v752 = vsub.s32 5, %v751
    %v753 = vrot.slane %v53, %v752
    %vm754 = vcmask 523264
    %v756 = vsel %vm754, %v748, 0
    %v759 = vsel %vm754, %v749, 0
    %761 = vmatprep.subr.mxu0 0.0
    %762 = vmatpush1.msra.mxu0 0.0
    %763 = vmatprep.subr.mxu0 0.0
    %764 = vmatpush1.msra.mxu0 0.0
    %765 = vmatprep.subr.mxu0 0.0
    %766 = vmatpush1.msra.mxu0 0.0
    %767 = vmatprep.subr.mxu0 0.0
    %768 = vmatpush1.msra.mxu0 0.0
    %769 = vmatprep.subr.mxu0 0.0
    %770 = vmatpush1.msra.mxu0 0.0
    %771 = vmatprep.subr.mxu0 0.0
    %772 = vmatpush1.msra.mxu0 0.0
    %773 = vmatprep.subr.mxu0 0.0
    %774 = vmatpush1.msra.mxu0 0.0
    %775 = vmatprep.subr.mxu0 0.0
    %776 = vmatpush1.msra.mxu0 0.0
    %777 = vmatprep.subr.mxu0 0.0
    %778 = vmatpush1.msra.mxu0 %v52
    %779 = vmatprep.subr.mxu0 0.0
    %780 = vmatpush1.msra.mxu0 %v51
    %781 = vmatprep.subr.mxu0 0.0
    %782 = vmatpush1.msra.mxu0 %v50
    %783 = vmatprep.subr.mxu0 0.0
    %784 = vmatpush1.msra.mxu0 %v49
    %785 = vmatprep.subr.mxu0 0.0
    %786 = vmatpush1.msra.mxu0 %v48
    %787 = vmatprep.subr.mxu0 0.0
    %788 = vmatpush1.msra.mxu0 %v47
    %789 = vmatprep.subr.mxu0 0.0
    %790 = vmatpush1.msra.mxu0 %v46
    %791 = vmatprep.subr.mxu0 0.0
    %792 = vmatpush1.msra.mxu0 %v45
    %793 = vmatprep.subr.mxu0 0.0
    %794 = vmatpush2.msra.mxu0 0.0
    %795 = vmatprep.subr.mxu0 0.0
    %796 = vmatpush2.msra.mxu0 0.0
    %797 = vmatprep.subr.mxu0 0.0
    %798 = vmatpush2.msra.mxu0 0.0
    %799 = vmatprep.subr.mxu0 0.0
    %800 = vmatpush2.msra.mxu0 0.0
    %801 = vmatprep.subr.mxu0 0.0
    %802 = vmatpush2.msra.mxu0 0.0
    %803 = vmatprep.subr.mxu0 0.0
    %804 = vmatpush2.msra.mxu0 0.0
    %805 = vmatprep.subr.mxu0 0.0
    %806 = vmatpush2.msra.mxu0 0.0
    %807 = vmatprep.subr.mxu0 0.0
    %808 = vmatpush2.msra.mxu0 0.0
    %809 = vmatprep.subr.mxu0 0.0
    %810 = vmatpush2.msra.mxu0 0.0
    %811 = vmatprep.subr.mxu0 0.0
    %812 = vmatpush2.msra.mxu0 0.0
    %813 = vmatprep.subr.mxu0 0.0
    %814 = vmatpush2.msra.mxu0 0.0
    %815 = vmatprep.subr.mxu0 0.0
    %816 = vmatpush2.msra.mxu0 0.0
    %817 = vmatprep.subr.mxu0 0.0
    %818 = vmatpush2.msra.mxu0 0.0
    %819 = vmatprep.subr.mxu0 0.0
    %820 = vmatpush2.msra.mxu0 0.0
    %821 = vmatprep.subr.mxu0 0.0
    %822 = vmatpush2.msra.mxu0 0.0
    %823 = vmatprep.subr.mxu0 0.0
    %824 = vmatpush2.msra.mxu0 0.0
    %825 = vmatprep.mubr.f32.mxu0 0.0
    %826 = vmatmul.mubr.f32.gmra.mxu0 %v756
    %v827 = vpop.f32.mrf.mxu0
    %v828 = vadd.f32 %v753, %v827
    %v829 = vpop.f32.mrf.mxu0
    %830 = vmatprep.mubr.f32.mxu0 0.0
    %831 = vmatmul.mubr.f32.gmra.mxu0 %v759
    %v832 = vpop.f32.mrf.mxu0
    %v833 = vadd.f32 %v753, %v832
    %v834 = vpop.f32.mrf.mxu0
    %835 = vdwg.mxu0
    %v836 = vadd.f32 %v623, %v828
    %v837 = vadd.f32 %v624, %v833
    %840 = vrot.lane.b32.xlu0 %v142, 32
    %v841 = vpop.permute.xlu0 %840
    %842 = vrot.lane.b32.xlu0 %v147, 32
    %v843 = vpop.permute.xlu0 %842
    %v846 = vsel %vm172, %v836, %v841
    %v847 = vsel %vm172, %v837, %v843
    %v848 = vsel %vm754, %v846, %v841
    %v849 = vsel %vm754, %v847, %v843
    %vm850 = vcmask 785408
    %v851 = vsel %vm850, %v848, 0.0
    %v852 = vsel %vm850, %v849, 0.0
    %853 = vst [vmem:[%s2] sm:$0xff] %v851
    %854 = vst [vmem:[%s2 + $0x8] sm:$0xff] %v852
    // Predicated region
    $region14: #{tremo_forward.1} parent=1 // pred_check
      _
    $region15: #{tremo_forward.1} parent=1 // pred_check_branch
      %856 = sbr.rel (0) target = $region17
    $region16: #{tremo_forward.1} parent=1 // pred_region
      _
    $region17: #{tremo_forward.1} parent=1 // pred_fallthru
      _
    // Predicated region
    $region18: #{tremo_forward.1} parent=1 // pred_check
      _
    $region19: #{tremo_forward.1} parent=1 // pred_check_branch
      %858 = sbr.rel (0) target = $region21
    $region20: #{tremo_forward.1} parent=1 // pred_region
      _
    $region21: #{tremo_forward.1} parent=1 // pred_fallthru
      _
    %859 = vsyncpa [#allocation3], 1

</llo_original>
